<compile_context>
chip_gen: v7x
topology: tpu7x:2x2x1
jax: 0.10.0
libtpu: 0.0.40
codegen_flags: <defaults>
</compile_context>

<pallas_src>
import functools
import math

import jax
import jax.numpy as jnp
from jax.experimental import pallas as pl
from jax.experimental.pallas import tpu as pltpu


# ----------------------------------------------------------------------------
# Kernel
# ----------------------------------------------------------------------------
def _fcnn_kernel(x_ref, w_ref, b_ref, o_ref):
    """Fused 5-layer MLP on one (tile_m, D) row-tile.

    x_ref: (tile_m, D) f32   w_ref: (L, D, D) bf16 (in, out)   b_ref: (L, 1, D) f32
    """
    n_layers = w_ref.shape[0]
    h = x_ref[...].astype(jnp.bfloat16)                 # cast activations once
    for l in range(n_layers):                           # static unroll (L = 5)
        y = jnp.dot(h, w_ref[l], preferred_element_type=jnp.float32) + b_ref[l]
        if l < n_layers - 1:
            # ReLU in f32, carry the activation between layers in bf16
            # (the next matmul only ever consumes the bf16 cast anyway).
            h = jnp.maximum(y, 0.0).astype(jnp.bfloat16)
        else:
            h = y
    o_ref[...] = h.astype(o_ref.dtype)


# ----------------------------------------------------------------------------
# Helpers
# ----------------------------------------------------------------------------
def _round_up(v, k):
    return ((v + k - 1) // k) * k


def _select_tile_m(m, tm):
    """Row-tile size: multiple of 8 (f32 sublanes) or exactly the full M."""
    tm = max(8, (min(int(tm), 2048) // 8) * 8)
    if m <= tm:
        if m > 64:
            # Keep at least 2 grid steps so v7x's second TensorCore gets work.
            return _round_up(_round_up(m, 2) // 2, 8)
        # Tiny M: single block; block_shape == full array dim is always legal.
        return m
    return tm


def _probe_kernel(x_ref, w_ref, o_ref):
    o_ref[...] = x_ref[...] + w_ref[...]


@functools.lru_cache(maxsize=1)
def _single_buffer_weights_ok():
    """Probe (once) whether pipeline_mode=pl.Buffered(1) lowers/compiles here."""
    try:
        w_spec = pl.BlockSpec((8, 128), lambda i: (0, 0),
                              pipeline_mode=pl.Buffered(1))
        probe = pl.pallas_call(
            _probe_kernel,
            out_shape=jax.ShapeDtypeStruct((16, 128), jnp.float32),
            grid=(2,),
            in_specs=[pl.BlockSpec((8, 128), lambda i: (i, 0)), w_spec],
            out_specs=pl.BlockSpec((8, 128), lambda i: (i, 0)),
        )
        jax.jit(probe).lower(
            jax.ShapeDtypeStruct((16, 128), jnp.float32),
            jax.ShapeDtypeStruct((8, 128), jnp.float32),
        ).compile()
        return True
    except Exception:
        return False


def _vmem_limit_bytes(tile_m, data_num, n_layers, single_buffered_weights):
    w_bufs = 1 if single_buffered_weights else 2
    w_bytes = w_bufs * n_layers * data_num * data_num * 2          # bf16 weights
    b_bytes = 2 * n_layers * data_num * 4                          # f32 biases
    io_bytes = 2 * 2 * tile_m * data_num * 4                       # dbl-buffered x + out
    act_bytes = 4 * tile_m * data_num * 4                          # in-kernel temporaries
    needed = int(1.25 * (w_bytes + b_bytes + io_bytes + act_bytes)) + (2 << 20)
    if needed <= (32 << 20):
        return None                                                # default is enough
    return min(needed, 110 << 20)


# ----------------------------------------------------------------------------
# Parameter packing (done ONCE, outside the per-call forward path)
# ----------------------------------------------------------------------------
def pack_params(params):
    """PyTorch-style params [(W(out,in), b(out,)), ...] -> packed kernel operands.

    Returns (W_packed: (L, D, D) bf16 stored (in, out), B_packed: (L, 1, D) f32).
    """
    w_packed = jnp.stack([jnp.asarray(w, jnp.float32).T for w, _ in params])
    b_packed = jnp.stack([jnp.asarray(b, jnp.float32).reshape(1, -1) for _, b in params])
    return w_packed.astype(jnp.bfloat16), b_packed


# ----------------------------------------------------------------------------
# Forward wrapper
# ----------------------------------------------------------------------------
def multichannel_fcnn(x, w_packed, b_packed, *, tm=512, out_dtype=None):
    """x: (batch, channel, data_num) f32; w_packed/b_packed from pack_params().

    NOTE: at small D (e.g. 128) and small M this call is launch-overhead /
    MXU-underfill bound on v6e/v7x; feed larger batch*channel per call rather
    than tuning tile sizes.
    """
    batch, channel, data_num = x.shape
    n_layers = w_packed.shape[0]
    assert w_packed.shape == (n_layers, data_num, data_num)
    assert b_packed.shape == (n_layers, 1, data_num)

    m = batch * channel
    x2d = x.reshape(m, data_num)

    tile_m = _select_tile_m(m, tm)
    grid_m = pl.cdiv(m, tile_m)          # edge tile is masked; no pad / no slice

    single_buf = _single_buffer_weights_ok()
    if single_buf:
        w_spec = pl.BlockSpec(w_packed.shape, lambda i: (0, 0, 0),
                              pipeline_mode=pl.Buffered(1))
        b_spec = pl.BlockSpec(b_packed.shape, lambda i: (0, 0, 0),
                              pipeline_mode=pl.Buffered(1))
    else:
        w_spec = pl.BlockSpec(w_packed.shape, lambda i: (0, 0, 0))
        b_spec = pl.BlockSpec(b_packed.shape, lambda i: (0, 0, 0))

    cp_kwargs = dict(dimension_semantics=("parallel",))
    vlim = _vmem_limit_bytes(tile_m, data_num, n_layers, single_buf)
    if vlim is not None:
        cp_kwargs["vmem_limit_bytes"] = vlim

    cost = pl.CostEstimate(
        flops=2 * n_layers * m * data_num * data_num,
        transcendentals=0,
        bytes_accessed=(2 * m * data_num * 4
                        + n_layers * data_num * data_num * 2
                        + n_layers * data_num * 4),
    )

    out = pl.pallas_call(
        _fcnn_kernel,
        out_shape=jax.ShapeDtypeStruct((m, data_num), out_dtype or x.dtype),
        grid=(grid_m,),
        in_specs=[
            pl.BlockSpec((tile_m, data_num), lambda i: (i, 0)),   # x row-tile
            w_spec,                                               # weights resident
            b_spec,                                               # biases resident
        ],
        out_specs=pl.BlockSpec((tile_m, data_num), lambda i: (i, 0)),
        compiler_params=pltpu.CompilerParams(**cp_kwargs),
        cost_estimate=cost,
    )(x2d, w_packed, b_packed)

    return out.reshape(batch, channel, data_num)


# ----------------------------------------------------------------------------
# Init + plain-JAX reference (PyTorch eval() semantics)
# ----------------------------------------------------------------------------
def init_params(key, data_num, num_layers=5):
    """PyTorch nn.Linear default init: U(-1/sqrt(in), 1/sqrt(in)) for W and b."""
    params = []
    bound = 1.0 / math.sqrt(data_num)
    for _ in range(num_layers):
        kw, kb, key = jax.random.split(key, 3)
        w = jax.random.uniform(kw, (data_num, data_num), jnp.float32, -bound, bound)
        b = jax.random.uniform(kb, (data_num,), jnp.float32, -bound, bound)
        params.append((w, b))
    return params


def reference_forward(x, params, matmul_dtype=jnp.float32):
    """Plain-JAX reference matching PyTorch eval() forward (optionally with the
    same bf16 matmul-operand cast as the kernel)."""
    batch, channel, data_num = x.shape
    h = x.reshape(-1, data_num).astype(jnp.float32)
    for i, (w, b) in enumerate(params):
        h = jnp.dot(h.astype(matmul_dtype),
                    jnp.asarray(w, jnp.float32).T.astype(matmul_dtype),
                    preferred_element_type=jnp.float32) + b
        if i < len(params) - 1:
            h = jnp.maximum(h, 0.0)
    return h.reshape(batch, channel, data_num)


# ----------------------------------------------------------------------------
# Main
# ----------------------------------------------------------------------------
if __name__ == "__main__":
    key = jax.random.PRNGKey(0)
    kx1, kx2, kp = jax.random.split(key, 3)

    # Small shapes consistent with the module (data_num scaled down from 512).
    data_num, channel = 128, 4
    params = init_params(kp, data_num)
    w_packed, b_packed = pack_params(params)   # pack / transpose once, off the hot path

    fwd = jax.jit(multichannel_fcnn, static_argnames=("tm", "out_dtype"))

    # Case 1: M = 32 rows -> single row-tile.
    x1 = jax.random.normal(kx1, (8, channel, data_num), jnp.float32)
    y1 = jax.block_until_ready(fwd(x1, w_packed, b_packed))
    assert y1.shape == x1.shape
    ref1_bf16 = reference_forward(x1, params, matmul_dtype=jnp.bfloat16)
    assert jnp.allclose(y1, ref1_bf16, atol=2e-2, rtol=2e-2), "mismatch vs bf16 reference"
    ref1_f32 = reference_forward(x1, params, matmul_dtype=jnp.float32)
    rel1 = jnp.linalg.norm(y1 - ref1_f32) / (jnp.linalg.norm(ref1_f32) + 1e-12)
    assert rel1 < 5e-2, f"relative error vs f32 reference too large: {rel1}"

    # Case 2: M = 72 rows -> 2 grid steps with an edge-masked last tile
    # (exercises the no-pad/no-slice path and the >=2-step split for v7x's 2 TCs).
    x2 = jax.random.normal(kx2, (18, channel, data_num), jnp.float32)
    y2 = jax.block_until_ready(fwd(x2, w_packed, b_packed))
    ref2_bf16 = reference_forward(x2, params, matmul_dtype=jnp.bfloat16)
    assert jnp.allclose(y2, ref2_bf16, atol=2e-2, rtol=2e-2), "edge-tile mismatch"

    print("KERNEL_OK")
</pallas_src>

<mosaic_0001>
module attributes {stable_mosaic.version = 11 : i64} {
  func.func @_fcnn_kernel(%arg0: i32, %arg1: memref<32x128xf32, #tpu.memory_space<vmem>>, %arg2: memref<5x128x128xbf16, #tpu.memory_space<vmem>>, %arg3: memref<5x1x128xf32, #tpu.memory_space<vmem>>, %arg4: memref<32x128xf32, #tpu.memory_space<vmem>>) attributes {dimension_semantics = [#tpu.dimension_semantics<parallel>], iteration_bounds = array<i64: 1>, scalar_prefetch = 0 : i64, scratch_operands = 0 : i64, tpu.core_type = #tpu.core_type<tc>, window_params = [{transform_indices = @transform_0, window_bounds = array<i64: 32, 128>}, {pipeline_mode = #tpu.pipeline_mode<synchronous>, transform_indices = @transform_1, window_bounds = array<i64: 5, 128, 128>}, {pipeline_mode = #tpu.pipeline_mode<synchronous>, transform_indices = @transform_2, window_bounds = array<i64: 5, 1, 128>}, {transform_indices = @transform_3, window_bounds = array<i64: 32, 128>}]} {
    %c0 = arith.constant 0 : index
    %c0_0 = arith.constant 0 : index
    %0 = vector.load %arg1[%c0, %c0_0] : memref<32x128xf32, #tpu.memory_space<vmem>>, vector<32x128xf32>
    %1 = arith.truncf %0 : vector<32x128xf32> to vector<32x128xbf16>
    %c0_1 = arith.constant 0 : index
    %c0_2 = arith.constant 0 : index
    %c0_3 = arith.constant 0 : index
    %2 = vector.load %arg2[%c0_1, %c0_2, %c0_3] : memref<5x128x128xbf16, #tpu.memory_space<vmem>>, vector<1x128x128xbf16>
    %3 = vector.shape_cast %2 : vector<1x128x128xbf16> to vector<128x128xbf16>
    %cst = arith.constant dense<0.000000e+00> : vector<32x128xf32>
    %4 = tpu.matmul %1, %3, %cst {dimension_numbers = #tpu.dot_dimension_numbers<[1], [0], [0], [1], [0, 0, 1, 1], [], []>} : vector<32x128xbf16>, vector<128x128xbf16>, vector<32x128xf32> -> vector<32x128xf32>
    %c0_4 = arith.constant 0 : index
    %c0_5 = arith.constant 0 : index
    %c0_6 = arith.constant 0 : index
    %5 = vector.load %arg3[%c0_4, %c0_5, %c0_6] : memref<5x1x128xf32, #tpu.memory_space<vmem>>, vector<1x1x128xf32>
    %6 = vector.shape_cast %5 : vector<1x1x128xf32> to vector<1x128xf32>
    %7 = vector.broadcast %6 : vector<1x128xf32> to vector<32x128xf32>
    %8 = arith.addf %4, %7 : vector<32x128xf32>
    %cst_7 = arith.constant 0.000000e+00 : f32
    %9 = vector.broadcast %cst_7 : f32 to vector<32x128xf32>
    %10 = arith.maximumf %8, %9 : vector<32x128xf32>
    %11 = arith.truncf %10 : vector<32x128xf32> to vector<32x128xbf16>
    %c1 = arith.constant 1 : index
    %c0_8 = arith.constant 0 : index
    %c0_9 = arith.constant 0 : index
    %12 = vector.load %arg2[%c1, %c0_8, %c0_9] : memref<5x128x128xbf16, #tpu.memory_space<vmem>>, vector<1x128x128xbf16>
    %13 = vector.shape_cast %12 : vector<1x128x128xbf16> to vector<128x128xbf16>
    %cst_10 = arith.constant dense<0.000000e+00> : vector<32x128xf32>
    %14 = tpu.matmul %11, %13, %cst_10 {dimension_numbers = #tpu.dot_dimension_numbers<[1], [0], [0], [1], [0, 0, 1, 1], [], []>} : vector<32x128xbf16>, vector<128x128xbf16>, vector<32x128xf32> -> vector<32x128xf32>
    %c1_11 = arith.constant 1 : index
    %c0_12 = arith.constant 0 : index
    %c0_13 = arith.constant 0 : index
    %15 = vector.load %arg3[%c1_11, %c0_12, %c0_13] : memref<5x1x128xf32, #tpu.memory_space<vmem>>, vector<1x1x128xf32>
    %16 = vector.shape_cast %15 : vector<1x1x128xf32> to vector<1x128xf32>
    %17 = vector.broadcast %16 : vector<1x128xf32> to vector<32x128xf32>
    %18 = arith.addf %14, %17 : vector<32x128xf32>
    %cst_14 = arith.constant 0.000000e+00 : f32
    %19 = vector.broadcast %cst_14 : f32 to vector<32x128xf32>
    %20 = arith.maximumf %18, %19 : vector<32x128xf32>
    %21 = arith.truncf %20 : vector<32x128xf32> to vector<32x128xbf16>
    %c2 = arith.constant 2 : index
    %c0_15 = arith.constant 0 : index
    %c0_16 = arith.constant 0 : index
    %22 = vector.load %arg2[%c2, %c0_15, %c0_16] : memref<5x128x128xbf16, #tpu.memory_space<vmem>>, vector<1x128x128xbf16>
    %23 = vector.shape_cast %22 : vector<1x128x128xbf16> to vector<128x128xbf16>
    %cst_17 = arith.constant dense<0.000000e+00> : vector<32x128xf32>
    %24 = tpu.matmul %21, %23, %cst_17 {dimension_numbers = #tpu.dot_dimension_numbers<[1], [0], [0], [1], [0, 0, 1, 1], [], []>} : vector<32x128xbf16>, vector<128x128xbf16>, vector<32x128xf32> -> vector<32x128xf32>
    %c2_18 = arith.constant 2 : index
    %c0_19 = arith.constant 0 : index
    %c0_20 = arith.constant 0 : index
    %25 = vector.load %arg3[%c2_18, %c0_19, %c0_20] : memref<5x1x128xf32, #tpu.memory_space<vmem>>, vector<1x1x128xf32>
    %26 = vector.shape_cast %25 : vector<1x1x128xf32> to vector<1x128xf32>
    %27 = vector.broadcast %26 : vector<1x128xf32> to vector<32x128xf32>
    %28 = arith.addf %24, %27 : vector<32x128xf32>
    %cst_21 = arith.constant 0.000000e+00 : f32
    %29 = vector.broadcast %cst_21 : f32 to vector<32x128xf32>
    %30 = arith.maximumf %28, %29 : vector<32x128xf32>
    %31 = arith.truncf %30 : vector<32x128xf32> to vector<32x128xbf16>
    %c3 = arith.constant 3 : index
    %c0_22 = arith.constant 0 : index
    %c0_23 = arith.constant 0 : index
    %32 = vector.load %arg2[%c3, %c0_22, %c0_23] : memref<5x128x128xbf16, #tpu.memory_space<vmem>>, vector<1x128x128xbf16>
    %33 = vector.shape_cast %32 : vector<1x128x128xbf16> to vector<128x128xbf16>
    %cst_24 = arith.constant dense<0.000000e+00> : vector<32x128xf32>
    %34 = tpu.matmul %31, %33, %cst_24 {dimension_numbers = #tpu.dot_dimension_numbers<[1], [0], [0], [1], [0, 0, 1, 1], [], []>} : vector<32x128xbf16>, vector<128x128xbf16>, vector<32x128xf32> -> vector<32x128xf32>
    %c3_25 = arith.constant 3 : index
    %c0_26 = arith.constant 0 : index
    %c0_27 = arith.constant 0 : index
    %35 = vector.load %arg3[%c3_25, %c0_26, %c0_27] : memref<5x1x128xf32, #tpu.memory_space<vmem>>, vector<1x1x128xf32>
    %36 = vector.shape_cast %35 : vector<1x1x128xf32> to vector<1x128xf32>
    %37 = vector.broadcast %36 : vector<1x128xf32> to vector<32x128xf32>
    %38 = arith.addf %34, %37 : vector<32x128xf32>
    %cst_28 = arith.constant 0.000000e+00 : f32
    %39 = vector.broadcast %cst_28 : f32 to vector<32x128xf32>
    %40 = arith.maximumf %38, %39 : vector<32x128xf32>
    %41 = arith.truncf %40 : vector<32x128xf32> to vector<32x128xbf16>
    %c4 = arith.constant 4 : index
    %c0_29 = arith.constant 0 : index
    %c0_30 = arith.constant 0 : index
    %42 = vector.load %arg2[%c4, %c0_29, %c0_30] : memref<5x128x128xbf16, #tpu.memory_space<vmem>>, vector<1x128x128xbf16>
    %43 = vector.shape_cast %42 : vector<1x128x128xbf16> to vector<128x128xbf16>
    %cst_31 = arith.constant dense<0.000000e+00> : vector<32x128xf32>
    %44 = tpu.matmul %41, %43, %cst_31 {dimension_numbers = #tpu.dot_dimension_numbers<[1], [0], [0], [1], [0, 0, 1, 1], [], []>} : vector<32x128xbf16>, vector<128x128xbf16>, vector<32x128xf32> -> vector<32x128xf32>
    %c4_32 = arith.constant 4 : index
    %c0_33 = arith.constant 0 : index
    %c0_34 = arith.constant 0 : index
    %45 = vector.load %arg3[%c4_32, %c0_33, %c0_34] : memref<5x1x128xf32, #tpu.memory_space<vmem>>, vector<1x1x128xf32>
    %46 = vector.shape_cast %45 : vector<1x1x128xf32> to vector<1x128xf32>
    %47 = vector.broadcast %46 : vector<1x128xf32> to vector<32x128xf32>
    %48 = arith.addf %44, %47 : vector<32x128xf32>
    %c0_35 = arith.constant 0 : index
    %c0_36 = arith.constant 0 : index
    %49 = vector.load %arg4[%c0_35, %c0_36] : memref<32x128xf32, #tpu.memory_space<vmem>>, vector<32x128xf32>
    tpu.vector_store %arg4[%c0_35, %c0_36], %48 {strides = array<i32>} : memref<32x128xf32, #tpu.memory_space<vmem>>, vector<32x128xf32>,
    return
  }
  func.func @transform_0(%arg0: i32) -> (i32, i32) {
    %c0_i32 = arith.constant 0 : i32
    %c0_i32_0 = arith.constant 0 : i32
    return %arg0, %c0_i32 : i32, i32
  }
  func.func @transform_1(%arg0: i32) -> (i32, i32, i32) {
    %c0_i32 = arith.constant 0 : i32
    %c0_i32_0 = arith.constant 0 : i32
    %c0_i32_1 = arith.constant 0 : i32
    %c0_i32_2 = arith.constant 0 : i32
    return %c0_i32, %c0_i32_0, %c0_i32_1 : i32, i32, i32
  }
  func.func @transform_2(%arg0: i32) -> (i32, i32, i32) {
    %c0_i32 = arith.constant 0 : i32
    %c0_i32_0 = arith.constant 0 : i32
    %c0_i32_1 = arith.constant 0 : i32
    %c0_i32_2 = arith.constant 0 : i32
    return %c0_i32, %c0_i32_0, %c0_i32_1 : i32, i32, i32
  }
  func.func @transform_3(%arg0: i32) -> (i32, i32) {
    %c0_i32 = arith.constant 0 : i32
    %c0_i32_0 = arith.constant 0 : i32
    return %arg0, %c0_i32 : i32, i32
  }
}

</mosaic_0001>

<llo_original>
// kernel: multichannel_fcnn.1
$region0: #{multichannel_fcnn.1}
  #allocation0 [shape = 'u32[]', space=smem, size = 0x4, offset = 0x4, fixed_abs, tag = 'smem constant byte address 0x4 - core index']
  #allocation1 [shape = 'u32[144,128]{1,0:T(1,128)}', space=vmem, size = 0x12000, scoped, tag = 'internal scratch']
  %s0 = inlined_call_operand.hbm [shape: f32[32,128], index: 0, kind: input, shape index: {}]
  %s1 = inlined_call_operand.hbm [shape: bf16[5,128,128], index: 1, kind: input, shape index: {}]
  %s2 = inlined_call_operand.vmem [shape: f32[5,1,128], index: 2, kind: input, shape index: {}]
  %s3 = inlined_call_operand.hbm [shape: f32[32,128], index: 3, kind: output, shape index: {}]
  %s4 = sld [smem:[#allocation0]]
  $region30: #{multichannel_fcnn.1} parent=0
    _
  %s6 = ssub.s32 1, %s4
  %s7 = scalar_select 0, %s6, %s4
  $region1: #{multichannel_fcnn.1} parent=0
    #allocation2 [shape = 'u8[16384]{0}', space=vmem, size = 0x4000, scoped, tag = 'input window, operand 0, single buffered']
    #allocation3 [shape = 's32[1]{0}', space=sflag, size = 0x4, scoped, tag = 'scoped memory for multichannel_fcnn.1']
    #allocation4 [shape = 's32[1]{0}', space=sflag, size = 0x4, scoped, tag = 'scoped memory for multichannel_fcnn.1']
    #allocation5 [shape = 'u8[163840]{0}', space=vmem, size = 0x28000, scoped, tag = 'input window, operand 1, single buffered']
    #allocation6 [shape = 's32[1]{0}', space=sflag, size = 0x4, scoped, tag = 'scoped memory for multichannel_fcnn.1']
    #allocation7 [shape = 'u8[16384]{0}', space=vmem, size = 0x4000, scoped, tag = 'output window, operand 0, single buffered']
    %8 = vsyncpa [#allocation3], 0
    %9 = vsyncpa [#allocation6], 0
    %10 = vsyncpa [#allocation4], 0
    // Predicated region
    $region2: #{multichannel_fcnn.1} parent=1 // pred_check
      _
    $region3: #{multichannel_fcnn.1} parent=1 // pred_check_branch
      %12 = sbr.rel (0) target = $region5
    $region4: #{multichannel_fcnn.1} parent=1 // pred_region
      %s14 = ssub.s32 512, 512
      %15 = vsyncadd [#allocation3], %s14
      %s16 = sshll.u32 [#allocation2], 4
      %s17 = int_to_ptr.vmem [resolvable:$true] %s16
      %22 = dma.hbm_to_vmem [thread:$0]  %s0, 512, %s17, [#allocation3], 128, 128, 8
    $region5: #{multichannel_fcnn.1} parent=1 // pred_fallthru
      _
    // Predicated region
    $region6: #{multichannel_fcnn.1} parent=1 // pred_check
      _
    $region7: #{multichannel_fcnn.1} parent=1 // pred_check_branch
      %24 = sbr.rel (0) target = $region9
    $region8: #{multichannel_fcnn.1} parent=1 // pred_region
      %s26 = ssub.s32 5120, 5120
      %27 = vsyncadd [#allocation6], %s26
      %s28 = sshll.u32 [#allocation5], 4
      %s29 = int_to_ptr.vmem [resolvable:$true] %s28
      %34 = dma.hbm_to_vmem [thread:$0]  %s1, 5120, %s29, [#allocation6], 64, 64, 4
    $region9: #{multichannel_fcnn.1} parent=1 // pred_fallthru
      _
    // Predicated region
    $region10: #{multichannel_fcnn.1} parent=1 // pred_check
      _
    $region11: #{multichannel_fcnn.1} parent=1 // pred_check_branch
      %36 = sbr.rel (0) target = $region13
    $region12: #{multichannel_fcnn.1} parent=1 // pred_region
      _
    $region13: #{multichannel_fcnn.1} parent=1 // pred_fallthru
      _
    // Predicated region
    $region14: #{multichannel_fcnn.1} parent=1 // pred_check
      _
    $region15: #{multichannel_fcnn.1} parent=1 // pred_check_branch
      %38 = sbr.rel (0) target = $region17
    $region16: #{multichannel_fcnn.1} parent=1 // pred_region
      %39 = dma.done [#allocation3], 512
    $region17: #{multichannel_fcnn.1} parent=1 // pred_fallthru
      _
    // Predicated region
    $region18: #{multichannel_fcnn.1} parent=1 // pred_check
      _
    $region19: #{multichannel_fcnn.1} parent=1 // pred_check_branch
      %41 = sbr.rel (0) target = $region21
    $region20: #{multichannel_fcnn.1} parent=1 // pred_region
      %42 = dma.done [#allocation6], 5120
    $region21: #{multichannel_fcnn.1} parent=1 // pred_fallthru
      _
    %v44 = vld [vmem:[#allocation2] sm:$0xff]
    %v45 = vld [vmem:[#allocation2 + $0x8] sm:$0xff]
    %v46 = vld [vmem:[#allocation2 + $0x10] sm:$0xff]
    %v47 = vld [vmem:[#allocation2 + $0x18] sm:$0xff]
    %v48 = vpack.c.bf16 %v45, %v44
    %v49 = vpack.c.bf16 %v47, %v46
    %v50 = vld [vmem:[#allocation5] sm:$0xf]
    %v51 = vld [vmem:[#allocation5 + $0x4] sm:$0xf]
    %v52 = vld [vmem:[#allocation5 + $0x8] sm:$0xf]
    %v53 = vld [vmem:[#allocation5 + $0xc] sm:$0xf]
    %v54 = vld [vmem:[#allocation5 + $0x10] sm:$0xf]
    %v55 = vld [vmem:[#allocation5 + $0x14] sm:$0xf]
    %v56 = vld [vmem:[#allocation5 + $0x18] sm:$0xf]
    %v57 = vld [vmem:[#allocation5 + $0x1c] sm:$0xf]
    %v58 = vld [vmem:[#allocation5 + $0x20] sm:$0xf]
    %v59 = vld [vmem:[#allocation5 + $0x24] sm:$0xf]
    %v60 = vld [vmem:[#allocation5 + $0x28] sm:$0xf]
    %v61 = vld [vmem:[#allocation5 + $0x2c] sm:$0xf]
    %v62 = vld [vmem:[#allocation5 + $0x30] sm:$0xf]
    %v63 = vld [vmem:[#allocation5 + $0x34] sm:$0xf]
    %v64 = vld [vmem:[#allocation5 + $0x38] sm:$0xf]
    %v65 = vld [vmem:[#allocation5 + $0x3c] sm:$0xf]
    %v66 = vld [vmem:[%s2] sm:$0x1]
    %v68 = vlaneseq
    %v69 = vshrl.u32 %v68, 7
    %v70 = vsub.s32 0, %v69
    %v71 = vrot.slane %v66, %v70
    %v89 = vunpack.c.l.b16 %v50
    %v90 = vunpack.c.l.b16 %v51
    %v91 = vunpack.c.l.b16 %v52
    %v92 = vunpack.c.l.b16 %v53
    %v93 = vunpack.c.l.b16 %v54
    %v94 = vunpack.c.l.b16 %v55
    %v95 = vunpack.c.l.b16 %v56
    %v96 = vunpack.c.l.b16 %v57
    %v97 = vunpack.c.l.b16 %v58
    %v98 = vunpack.c.l.b16 %v59
    %v99 = vunpack.c.l.b16 %v60
    %v100 = vunpack.c.l.b16 %v61
    %v101 = vunpack.c.l.b16 %v62
    %v102 = vunpack.c.l.b16 %v63
    %v103 = vunpack.c.l.b16 %v64
    %v104 = vunpack.c.l.b16 %v65
    %v105 = vpack.c.b16 %v90, %v89
    %v106 = vpack.c.b16 %v92, %v91
    %v107 = vpack.c.b16 %v94, %v93
    %v108 = vpack.c.b16 %v96, %v95
    %v109 = vpack.c.b16 %v98, %v97
    %v110 = vpack.c.b16 %v100, %v99
    %v111 = vpack.c.b16 %v102, %v101
    %v112 = vpack.c.b16 %v104, %v103
    %121 = vmatprep.subr.bf16.mxu0 0
    %122 = vmatpush1.bf16.msra.mxu0 %v105
    %123 = vmatprep.subr.bf16.mxu0 0
    %124 = vmatpush1.bf16.msra.mxu0 %v106
    %125 = vmatprep.subr.bf16.mxu0 0
    %126 = vmatpush1.bf16.msra.mxu0 %v107
    %127 = vmatprep.subr.bf16.mxu0 0
    %128 = vmatpush1.bf16.msra.mxu0 %v108
    %129 = vmatprep.subr.bf16.mxu0 0
    %130 = vmatpush1.bf16.msra.mxu0 %v109
    %131 = vmatprep.subr.bf16.mxu0 0
    %132 = vmatpush1.bf16.msra.mxu0 %v110
    %133 = vmatprep.subr.bf16.mxu0 0
    %134 = vmatpush1.bf16.msra.mxu0 %v111
    %135 = vmatprep.subr.bf16.mxu0 0
    %136 = vmatpush1.bf16.msra.mxu0 %v112
    %137 = vmatprep.subr.bf16.mxu0 0
    %138 = vmatpush1.bf16.msra.mxu0 0
    %139 = vmatprep.subr.bf16.mxu0 0
    %140 = vmatpush1.bf16.msra.mxu0 0
    %141 = vmatprep.subr.bf16.mxu0 0
    %142 = vmatpush1.bf16.msra.mxu0 0
    %143 = vmatprep.subr.bf16.mxu0 0
    %144 = vmatpush1.bf16.msra.mxu0 0
    %145 = vmatprep.subr.bf16.mxu0 0
    %146 = vmatpush1.bf16.msra.mxu0 0
    %147 = vmatprep.subr.bf16.mxu0 0
    %148 = vmatpush1.bf16.msra.mxu0 0
    %149 = vmatprep.subr.bf16.mxu0 0
    %150 = vmatpush1.bf16.msra.mxu0 0
    %151 = vmatprep.subr.bf16.mxu0 0
    %152 = vmatpush1.bf16.msra.mxu0 0
    %153 = vmatprep.mubr.bf16.mxu0 0
    %154 = vmatmul.mubr.bf16.gmra.mrb[0].mxu0 %v48
    %v155 = vpop.f32.mrb[0].mxu0
    %v156 = vadd.f32 %v71, %v155
    %v157 = vpop.f32.mrb[0].mxu0
    %v158 = vpop.f32.mrb[0].mxu0
    %v159 = vadd.f32 %v71, %v158
    %v160 = vpop.f32.mrb[0].mxu0
    %161 = vmatprep.mubr.bf16.mxu0 0
    %162 = vmatmul.mubr.bf16.gmra.mrb[0].mxu0 %v49
    %v163 = vpop.f32.mrb[0].mxu0
    %v164 = vadd.f32 %v71, %v163
    %v165 = vpop.f32.mrb[0].mxu0
    %v166 = vpop.f32.mrb[0].mxu0
    %v167 = vadd.f32 %v71, %v166
    %v168 = vpop.f32.mrb[0].mxu0
    %169 = vdwg.mxu0
    %v170 = vmax.f32 %v156, 0.0
    %v171 = vmax.f32 %v159, 0.0
    %v172 = vmax.f32 %v164, 0.0
    %v173 = vmax.f32 %v167, 0.0
    %v174 = vpack.c.bf16 %v171, %v170
    %v175 = vpack.c.bf16 %v173, %v172
    %s176 = scalar_lea.vmem [#allocation5], 64
    %v177 = vld [vmem:[%s176] sm:$0xf]
    %v178 = vld [vmem:[%s176 + $0x4] sm:$0xf]
    %v179 = vld [vmem:[%s176 + $0x8] sm:$0xf]
    %v180 = vld [vmem:[%s176 + $0xc] sm:$0xf]
    %v181 = vld [vmem:[%s176 + $0x10] sm:$0xf]
    %v182 = vld [vmem:[%s176 + $0x14] sm:$0xf]
    %v183 = vld [vmem:[%s176 + $0x18] sm:$0xf]
    %v184 = vld [vmem:[%s176 + $0x1c] sm:$0xf]
    %v185 = vld [vmem:[%s176 + $0x20] sm:$0xf]
    %v186 = vld [vmem:[%s176 + $0x24] sm:$0xf]
    %v187 = vld [vmem:[%s176 + $0x28] sm:$0xf]
    %v188 = vld [vmem:[%s176 + $0x2c] sm:$0xf]
    %v189 = vld [vmem:[%s176 + $0x30] sm:$0xf]
    %v190 = vld [vmem:[%s176 + $0x34] sm:$0xf]
    %v191 = vld [vmem:[%s176 + $0x38] sm:$0xf]
    %v192 = vld [vmem:[%s176 + $0x3c] sm:$0xf]
    %s193 = scalar_lea.vmem %s2, 1
    %v194 = vld [vmem:[%s193] sm:$0x1]
    %v196 = vlaneseq
    %v197 = vshrl.u32 %v196, 7
    %v198 = vsub.s32 0, %v197
    %v199 = vrot.slane %v194, %v198
    %v217 = vunpack.c.l.b16 %v177
    %v218 = vunpack.c.l.b16 %v178
    %v219 = vunpack.c.l.b16 %v179
    %v220 = vunpack.c.l.b16 %v180
    %v221 = vunpack.c.l.b16 %v181
    %v222 = vunpack.c.l.b16 %v182
    %v223 = vunpack.c.l.b16 %v183
    %v224 = vunpack.c.l.b16 %v184
    %v225 = vunpack.c.l.b16 %v185
    %v226 = vunpack.c.l.b16 %v186
    %v227 = vunpack.c.l.b16 %v187
    %v228 = vunpack.c.l.b16 %v188
    %v229 = vunpack.c.l.b16 %v189
    %v230 = vunpack.c.l.b16 %v190
    %v231 = vunpack.c.l.b16 %v191
    %v232 = vunpack.c.l.b16 %v192
    %v233 = vpack.c.b16 %v218, %v217
    %v234 = vpack.c.b16 %v220, %v219
    %v235 = vpack.c.b16 %v222, %v221
    %v236 = vpack.c.b16 %v224, %v223
    %v237 = vpack.c.b16 %v226, %v225
    %v238 = vpack.c.b16 %v228, %v227
    %v239 = vpack.c.b16 %v230, %v229
    %v240 = vpack.c.b16 %v232, %v231
    %249 = vmatprep.subr.bf16.mxu0 0
    %250 = vmatpush1.bf16.msra.mxu0 %v233
    %251 = vmatprep.subr.bf16.mxu0 0
    %252 = vmatpush1.bf16.msra.mxu0 %v234
    %253 = vmatprep.subr.bf16.mxu0 0
    %254 = vmatpush1.bf16.msra.mxu0 %v235
    %255 = vmatprep.subr.bf16.mxu0 0
    %256 = vmatpush1.bf16.msra.mxu0 %v236
    %257 = vmatprep.subr.bf16.mxu0 0
    %258 = vmatpush1.bf16.msra.mxu0 %v237
    %259 = vmatprep.subr.bf16.mxu0 0
    %260 = vmatpush1.bf16.msra.mxu0 %v238
    %261 = vmatprep.subr.bf16.mxu0 0
    %262 = vmatpush1.bf16.msra.mxu0 %v239
    %263 = vmatprep.subr.bf16.mxu0 0
    %264 = vmatpush1.bf16.msra.mxu0 %v240
    %265 = vmatprep.subr.bf16.mxu0 0
    %266 = vmatpush1.bf16.msra.mxu0 0
    %267 = vmatprep.subr.bf16.mxu0 0
    %268 = vmatpush1.bf16.msra.mxu0 0
    %269 = vmatprep.subr.bf16.mxu0 0
    %270 = vmatpush1.bf16.msra.mxu0 0
    %271 = vmatprep.subr.bf16.mxu0 0
    %272 = vmatpush1.bf16.msra.mxu0 0
    %273 = vmatprep.subr.bf16.mxu0 0
    %274 = vmatpush1.bf16.msra.mxu0 0
    %275 = vmatprep.subr.bf16.mxu0 0
    %276 = vmatpush1.bf16.msra.mxu0 0
    %277 = vmatprep.subr.bf16.mxu0 0
    %278 = vmatpush1.bf16.msra.mxu0 0
    %279 = vmatprep.subr.bf16.mxu0 0
    %280 = vmatpush1.bf16.msra.mxu0 0
    %281 = vmatprep.mubr.bf16.mxu0 0
    %282 = vmatmul.mubr.bf16.gmra.mrb[0].mxu0 %v174
    %v283 = vpop.f32.mrb[0].mxu0
    %v284 = vadd.f32 %v199, %v283
    %v285 = vpop.f32.mrb[0].mxu0
    %v286 = vpop.f32.mrb[0].mxu0
    %v287 = vadd.f32 %v199, %v286
    %v288 = vpop.f32.mrb[0].mxu0
    %289 = vmatprep.mubr.bf16.mxu0 0
    %290 = vmatmul.mubr.bf16.gmra.mrb[0].mxu0 %v175
    %v291 = vpop.f32.mrb[0].mxu0
    %v292 = vadd.f32 %v199, %v291
    %v293 = vpop.f32.mrb[0].mxu0
    %v294 = vpop.f32.mrb[0].mxu0
    %v295 = vadd.f32 %v199, %v294
    %v296 = vpop.f32.mrb[0].mxu0
    %297 = vdwg.mxu0
    %v298 = vmax.f32 %v284, 0.0
    %v299 = vmax.f32 %v287, 0.0
    %v300 = vmax.f32 %v292, 0.0
    %v301 = vmax.f32 %v295, 0.0
    %v302 = vpack.c.bf16 %v299, %v298
    %v303 = vpack.c.bf16 %v301, %v300
    %s304 = scalar_lea.vmem [#allocation5], 128
    %v305 = vld [vmem:[%s304] sm:$0xf]
    %v306 = vld [vmem:[%s304 + $0x4] sm:$0xf]
    %v307 = vld [vmem:[%s304 + $0x8] sm:$0xf]
    %v308 = vld [vmem:[%s304 + $0xc] sm:$0xf]
    %v309 = vld [vmem:[%s304 + $0x10] sm:$0xf]
    %v310 = vld [vmem:[%s304 + $0x14] sm:$0xf]
    %v311 = vld [vmem:[%s304 + $0x18] sm:$0xf]
    %v312 = vld [vmem:[%s304 + $0x1c] sm:$0xf]
    %v313 = vld [vmem:[%s304 + $0x20] sm:$0xf]
    %v314 = vld [vmem:[%s304 + $0x24] sm:$0xf]
    %v315 = vld [vmem:[%s304 + $0x28] sm:$0xf]
    %v316 = vld [vmem:[%s304 + $0x2c] sm:$0xf]
    %v317 = vld [vmem:[%s304 + $0x30] sm:$0xf]
    %v318 = vld [vmem:[%s304 + $0x34] sm:$0xf]
    %v319 = vld [vmem:[%s304 + $0x38] sm:$0xf]
    %v320 = vld [vmem:[%s304 + $0x3c] sm:$0xf]
    %s321 = scalar_lea.vmem %s2, 2
    %v322 = vld [vmem:[%s321] sm:$0x1]
    %v324 = vlaneseq
    %v325 = vshrl.u32 %v324, 7
    %v326 = vsub.s32 0, %v325
    %v327 = vrot.slane %v322, %v326
    %v345 = vunpack.c.l.b16 %v305
    %v346 = vunpack.c.l.b16 %v306
    %v347 = vunpack.c.l.b16 %v307
    %v348 = vunpack.c.l.b16 %v308
    %v349 = vunpack.c.l.b16 %v309
    %v350 = vunpack.c.l.b16 %v310
    %v351 = vunpack.c.l.b16 %v311
    %v352 = vunpack.c.l.b16 %v312
    %v353 = vunpack.c.l.b16 %v313
    %v354 = vunpack.c.l.b16 %v314
    %v355 = vunpack.c.l.b16 %v315
    %v356 = vunpack.c.l.b16 %v316
    %v357 = vunpack.c.l.b16 %v317
    %v358 = vunpack.c.l.b16 %v318
    %v359 = vunpack.c.l.b16 %v319
    %v360 = vunpack.c.l.b16 %v320
    %v361 = vpack.c.b16 %v346, %v345
    %v362 = vpack.c.b16 %v348, %v347
    %v363 = vpack.c.b16 %v350, %v349
    %v364 = vpack.c.b16 %v352, %v351
    %v365 = vpack.c.b16 %v354, %v353
    %v366 = vpack.c.b16 %v356, %v355
    %v367 = vpack.c.b16 %v358, %v357
    %v368 = vpack.c.b16 %v360, %v359
    %377 = vmatprep.subr.bf16.mxu0 0
    %378 = vmatpush1.bf16.msra.mxu0 %v361
    %379 = vmatprep.subr.bf16.mxu0 0
    %380 = vmatpush1.bf16.msra.mxu0 %v362
    %381 = vmatprep.subr.bf16.mxu0 0
    %382 = vmatpush1.bf16.msra.mxu0 %v363
    %383 = vmatprep.subr.bf16.mxu0 0
    %384 = vmatpush1.bf16.msra.mxu0 %v364
    %385 = vmatprep.subr.bf16.mxu0 0
    %386 = vmatpush1.bf16.msra.mxu0 %v365
    %387 = vmatprep.subr.bf16.mxu0 0
    %388 = vmatpush1.bf16.msra.mxu0 %v366
    %389 = vmatprep.subr.bf16.mxu0 0
    %390 = vmatpush1.bf16.msra.mxu0 %v367
    %391 = vmatprep.subr.bf16.mxu0 0
    %392 = vmatpush1.bf16.msra.mxu0 %v368
    %393 = vmatprep.subr.bf16.mxu0 0
    %394 = vmatpush1.bf16.msra.mxu0 0
    %395 = vmatprep.subr.bf16.mxu0 0
    %396 = vmatpush1.bf16.msra.mxu0 0
    %397 = vmatprep.subr.bf16.mxu0 0
    %398 = vmatpush1.bf16.msra.mxu0 0
    %399 = vmatprep.subr.bf16.mxu0 0
    %400 = vmatpush1.bf16.msra.mxu0 0
    %401 = vmatprep.subr.bf16.mxu0 0
    %402 = vmatpush1.bf16.msra.mxu0 0
    %403 = vmatprep.subr.bf16.mxu0 0
    %404 = vmatpush1.bf16.msra.mxu0 0
    %405 = vmatprep.subr.bf16.mxu0 0
    %406 = vmatpush1.bf16.msra.mxu0 0
    %407 = vmatprep.subr.bf16.mxu0 0
    %408 = vmatpush1.bf16.msra.mxu0 0
    %409 = vmatprep.mubr.bf16.mxu0 0
    %410 = vmatmul.mubr.bf16.gmra.mrb[0].mxu0 %v302
    %v411 = vpop.f32.mrb[0].mxu0
    %v412 = vadd.f32 %v327, %v411
    %v413 = vpop.f32.mrb[0].mxu0
    %v414 = vpop.f32.mrb[0].mxu0
    %v415 = vadd.f32 %v327, %v414
    %v416 = vpop.f32.mrb[0].mxu0
    %417 = vmatprep.mubr.bf16.mxu0 0
    %418 = vmatmul.mubr.bf16.gmra.mrb[0].mxu0 %v303
    %v419 = vpop.f32.mrb[0].mxu0
    %v420 = vadd.f32 %v327, %v419
    %v421 = vpop.f32.mrb[0].mxu0
    %v422 = vpop.f32.mrb[0].mxu0
    %v423 = vadd.f32 %v327, %v422
    %v424 = vpop.f32.mrb[0].mxu0
    %425 = vdwg.mxu0
    %v426 = vmax.f32 %v412, 0.0
    %v427 = vmax.f32 %v415, 0.0
    %v428 = vmax.f32 %v420, 0.0
    %v429 = vmax.f32 %v423, 0.0
    %v430 = vpack.c.bf16 %v427, %v426
    %v431 = vpack.c.bf16 %v429, %v428
    %s432 = scalar_lea.vmem [#allocation5], 192
    %v433 = vld [vmem:[%s432] sm:$0xf]
    %v434 = vld [vmem:[%s432 + $0x4] sm:$0xf]
    %v435 = vld [vmem:[%s432 + $0x8] sm:$0xf]
    %v436 = vld [vmem:[%s432 + $0xc] sm:$0xf]
    %v437 = vld [vmem:[%s432 + $0x10] sm:$0xf]
    %v438 = vld [vmem:[%s432 + $0x14] sm:$0xf]
    %v439 = vld [vmem:[%s432 + $0x18] sm:$0xf]
    %v440 = vld [vmem:[%s432 + $0x1c] sm:$0xf]
    %v441 = vld [vmem:[%s432 + $0x20] sm:$0xf]
    %v442 = vld [vmem:[%s432 + $0x24] sm:$0xf]
    %v443 = vld [vmem:[%s432 + $0x28] sm:$0xf]
    %v444 = vld [vmem:[%s432 + $0x2c] sm:$0xf]
    %v445 = vld [vmem:[%s432 + $0x30] sm:$0xf]
    %v446 = vld [vmem:[%s432 + $0x34] sm:$0xf]
    %v447 = vld [vmem:[%s432 + $0x38] sm:$0xf]
    %v448 = vld [vmem:[%s432 + $0x3c] sm:$0xf]
    %s449 = scalar_lea.vmem %s2, 3
    %v450 = vld [vmem:[%s449] sm:$0x1]
    %v452 = vlaneseq
    %v453 = vshrl.u32 %v452, 7
    %v454 = vsub.s32 0, %v453
    %v455 = vrot.slane %v450, %v454
    %v473 = vunpack.c.l.b16 %v433
    %v474 = vunpack.c.l.b16 %v434
    %v475 = vunpack.c.l.b16 %v435
    %v476 = vunpack.c.l.b16 %v436
    %v477 = vunpack.c.l.b16 %v437
    %v478 = vunpack.c.l.b16 %v438
    %v479 = vunpack.c.l.b16 %v439
    %v480 = vunpack.c.l.b16 %v440
    %v481 = vunpack.c.l.b16 %v441
    %v482 = vunpack.c.l.b16 %v442
    %v483 = vunpack.c.l.b16 %v443
    %v484 = vunpack.c.l.b16 %v444
    %v485 = vunpack.c.l.b16 %v445
    %v486 = vunpack.c.l.b16 %v446
    %v487 = vunpack.c.l.b16 %v447
    %v488 = vunpack.c.l.b16 %v448
    %v489 = vpack.c.b16 %v474, %v473
    %v490 = vpack.c.b16 %v476, %v475
    %v491 = vpack.c.b16 %v478, %v477
    %v492 = vpack.c.b16 %v480, %v479
    %v493 = vpack.c.b16 %v482, %v481
    %v494 = vpack.c.b16 %v484, %v483
    %v495 = vpack.c.b16 %v486, %v485
    %v496 = vpack.c.b16 %v488, %v487
    %505 = vmatprep.subr.bf16.mxu0 0
    %506 = vmatpush1.bf16.msra.mxu0 %v489
    %507 = vmatprep.subr.bf16.mxu0 0
    %508 = vmatpush1.bf16.msra.mxu0 %v490
    %509 = vmatprep.subr.bf16.mxu0 0
    %510 = vmatpush1.bf16.msra.mxu0 %v491
    %511 = vmatprep.subr.bf16.mxu0 0
    %512 = vmatpush1.bf16.msra.mxu0 %v492
    %513 = vmatprep.subr.bf16.mxu0 0
    %514 = vmatpush1.bf16.msra.mxu0 %v493
    %515 = vmatprep.subr.bf16.mxu0 0
    %516 = vmatpush1.bf16.msra.mxu0 %v494
    %517 = vmatprep.subr.bf16.mxu0 0
    %518 = vmatpush1.bf16.msra.mxu0 %v495
    %519 = vmatprep.subr.bf16.mxu0 0
    %520 = vmatpush1.bf16.msra.mxu0 %v496
    %521 = vmatprep.subr.bf16.mxu0 0
    %522 = vmatpush1.bf16.msra.mxu0 0
    %523 = vmatprep.subr.bf16.mxu0 0
    %524 = vmatpush1.bf16.msra.mxu0 0
    %525 = vmatprep.subr.bf16.mxu0 0
    %526 = vmatpush1.bf16.msra.mxu0 0
    %527 = vmatprep.subr.bf16.mxu0 0
    %528 = vmatpush1.bf16.msra.mxu0 0
    %529 = vmatprep.subr.bf16.mxu0 0
    %530 = vmatpush1.bf16.msra.mxu0 0
    %531 = vmatprep.subr.bf16.mxu0 0
    %532 = vmatpush1.bf16.msra.mxu0 0
    %533 = vmatprep.subr.bf16.mxu0 0
    %534 = vmatpush1.bf16.msra.mxu0 0
    %535 = vmatprep.subr.bf16.mxu0 0
    %536 = vmatpush1.bf16.msra.mxu0 0
    %537 = vmatprep.mubr.bf16.mxu0 0
    %538 = vmatmul.mubr.bf16.gmra.mrb[0].mxu0 %v430
    %v539 = vpop.f32.mrb[0].mxu0
    %v540 = vadd.f32 %v455, %v539
    %v541 = vpop.f32.mrb[0].mxu0
    %v542 = vpop.f32.mrb[0].mxu0
    %v543 = vadd.f32 %v455, %v542
    %v544 = vpop.f32.mrb[0].mxu0
    %545 = vmatprep.mubr.bf16.mxu0 0
    %546 = vmatmul.mubr.bf16.gmra.mrb[0].mxu0 %v431
    %v547 = vpop.f32.mrb[0].mxu0
    %v548 = vadd.f32 %v455, %v547
    %v549 = vpop.f32.mrb[0].mxu0
    %v550 = vpop.f32.mrb[0].mxu0
    %v551 = vadd.f32 %v455, %v550
    %v552 = vpop.f32.mrb[0].mxu0
    %553 = vdwg.mxu0
    %v554 = vmax.f32 %v540, 0.0
    %v555 = vmax.f32 %v543, 0.0
    %v556 = vmax.f32 %v548, 0.0
    %v557 = vmax.f32 %v551, 0.0
    %v558 = vpack.c.bf16 %v555, %v554
    %v559 = vpack.c.bf16 %v557, %v556
    %s560 = scalar_lea.vmem [#allocation5], 256
    %v561 = vld [vmem:[%s560] sm:$0xf]
    %v562 = vld [vmem:[%s560 + $0x4] sm:$0xf]
    %v563 = vld [vmem:[%s560 + $0x8] sm:$0xf]
    %v564 = vld [vmem:[%s560 + $0xc] sm:$0xf]
    %v565 = vld [vmem:[%s560 + $0x10] sm:$0xf]
    %v566 = vld [vmem:[%s560 + $0x14] sm:$0xf]
    %v567 = vld [vmem:[%s560 + $0x18] sm:$0xf]
    %v568 = vld [vmem:[%s560 + $0x1c] sm:$0xf]
    %v569 = vld [vmem:[%s560 + $0x20] sm:$0xf]
    %v570 = vld [vmem:[%s560 + $0x24] sm:$0xf]
    %v571 = vld [vmem:[%s560 + $0x28] sm:$0xf]
    %v572 = vld [vmem:[%s560 + $0x2c] sm:$0xf]
    %v573 = vld [vmem:[%s560 + $0x30] sm:$0xf]
    %v574 = vld [vmem:[%s560 + $0x34] sm:$0xf]
    %v575 = vld [vmem:[%s560 + $0x38] sm:$0xf]
    %v576 = vld [vmem:[%s560 + $0x3c] sm:$0xf]
    %s577 = scalar_lea.vmem %s2, 4
    %v578 = vld [vmem:[%s577] sm:$0x1]
    %v580 = vlaneseq
    %v581 = vshrl.u32 %v580, 7
    %v582 = vsub.s32 0, %v581
    %v583 = vrot.slane %v578, %v582
    %v601 = vunpack.c.l.b16 %v561
    %v602 = vunpack.c.l.b16 %v562
    %v603 = vunpack.c.l.b16 %v563
    %v604 = vunpack.c.l.b16 %v564
    %v605 = vunpack.c.l.b16 %v565
    %v606 = vunpack.c.l.b16 %v566
    %v607 = vunpack.c.l.b16 %v567
    %v608 = vunpack.c.l.b16 %v568
    %v609 = vunpack.c.l.b16 %v569
    %v610 = vunpack.c.l.b16 %v570
    %v611 = vunpack.c.l.b16 %v571
    %v612 = vunpack.c.l.b16 %v572
    %v613 = vunpack.c.l.b16 %v573
    %v614 = vunpack.c.l.b16 %v574
    %v615 = vunpack.c.l.b16 %v575
    %v616 = vunpack.c.l.b16 %v576
    %v617 = vpack.c.b16 %v602, %v601
    %v618 = vpack.c.b16 %v604, %v603
    %v619 = vpack.c.b16 %v606, %v605
    %v620 = vpack.c.b16 %v608, %v607
    %v621 = vpack.c.b16 %v610, %v609
    %v622 = vpack.c.b16 %v612, %v611
    %v623 = vpack.c.b16 %v614, %v613
    %v624 = vpack.c.b16 %v616, %v615
    %633 = vmatprep.subr.bf16.mxu0 0
    %634 = vmatpush1.bf16.msra.mxu0 %v617
    %635 = vmatprep.subr.bf16.mxu0 0
    %636 = vmatpush1.bf16.msra.mxu0 %v618
    %637 = vmatprep.subr.bf16.mxu0 0
    %638 = vmatpush1.bf16.msra.mxu0 %v619
    %639 = vmatprep.subr.bf16.mxu0 0
    %640 = vmatpush1.bf16.msra.mxu0 %v620
    %641 = vmatprep.subr.bf16.mxu0 0
    %642 = vmatpush1.bf16.msra.mxu0 %v621
    %643 = vmatprep.subr.bf16.mxu0 0
    %644 = vmatpush1.bf16.msra.mxu0 %v622
    %645 = vmatprep.subr.bf16.mxu0 0
    %646 = vmatpush1.bf16.msra.mxu0 %v623
    %647 = vmatprep.subr.bf16.mxu0 0
    %648 = vmatpush1.bf16.msra.mxu0 %v624
    %649 = vmatprep.subr.bf16.mxu0 0
    %650 = vmatpush1.bf16.msra.mxu0 0
    %651 = vmatprep.subr.bf16.mxu0 0
    %652 = vmatpush1.bf16.msra.mxu0 0
    %653 = vmatprep.subr.bf16.mxu0 0
    %654 = vmatpush1.bf16.msra.mxu0 0
    %655 = vmatprep.subr.bf16.mxu0 0
    %656 = vmatpush1.bf16.msra.mxu0 0
    %657 = vmatprep.subr.bf16.mxu0 0
    %658 = vmatpush1.bf16.msra.mxu0 0
    %659 = vmatprep.subr.bf16.mxu0 0
    %660 = vmatpush1.bf16.msra.mxu0 0
    %661 = vmatprep.subr.bf16.mxu0 0
    %662 = vmatpush1.bf16.msra.mxu0 0
    %663 = vmatprep.subr.bf16.mxu0 0
    %664 = vmatpush1.bf16.msra.mxu0 0
    %665 = vmatprep.mubr.bf16.mxu0 0
    %666 = vmatmul.mubr.bf16.gmra.mrb[0].mxu0 %v558
    %v667 = vpop.f32.mrb[0].mxu0
    %v668 = vadd.f32 %v583, %v667
    %v669 = vpop.f32.mrb[0].mxu0
    %v670 = vpop.f32.mrb[0].mxu0
    %v671 = vadd.f32 %v583, %v670
    %v672 = vpop.f32.mrb[0].mxu0
    %673 = vmatprep.mubr.bf16.mxu0 0
    %674 = vmatmul.mubr.bf16.gmra.mrb[0].mxu0 %v559
    %v675 = vpop.f32.mrb[0].mxu0
    %v676 = vadd.f32 %v583, %v675
    %v677 = vpop.f32.mrb[0].mxu0
    %v678 = vpop.f32.mrb[0].mxu0
    %v679 = vadd.f32 %v583, %v678
    %v680 = vpop.f32.mrb[0].mxu0
    %681 = vdwg.mxu0
    %682 = vst [vmem:[#allocation7] sm:$0xff] %v668
    %683 = vst [vmem:[#allocation7 + $0x8] sm:$0xff] %v671
    %684 = vst [vmem:[#allocation7 + $0x10] sm:$0xff] %v676
    %685 = vst [vmem:[#allocation7 + $0x18] sm:$0xff] %v679
    // Predicated region
    $region22: #{multichannel_fcnn.1} parent=1 // pred_check
      _
    $region23: #{multichannel_fcnn.1} parent=1 // pred_check_branch
      %687 = sbr.rel (0) target = $region25
    $region24: #{multichannel_fcnn.1} parent=1 // pred_region
      %s689 = ssub.s32 512, 512
      %690 = vsyncadd [#allocation4], %s689
      %s691 = sshll.u32 [#allocation7], 4
      %s692 = int_to_ptr.vmem [resolvable:$true] %s691
      %697 = dma.vmem_to_hbm [thread:$0]  %s692, 512, %s3, [#allocation4], 128, 128, 8
    $region25: #{multichannel_fcnn.1} parent=1 // pred_fallthru
      _
    // Predicated region
    $region26: #{multichannel_fcnn.1} parent=1 // pred_check
      _
    $region27: #{multichannel_fcnn.1} parent=1 // pred_check_branch
      %699 = sbr.rel (0) target = $region29
    $region28: #{multichannel_fcnn.1} parent=1 // pred_region
      %700 = dma.done [#allocation4], 512
    $region29: #{multichannel_fcnn.1} parent=1 // pred_fallthru
      _
    %701 = vsyncpa [#allocation3], 1
    %702 = vsyncpa [#allocation6], 1
    %703 = vsyncpa [#allocation4], 1

</llo_original>
